<compile_context>
chip_gen: v7x
topology: tpu7x:2x2x1
jax: 0.10.0
libtpu: 0.0.40
codegen_flags: <defaults>
</compile_context>

<pallas_src>
import math

import jax
import jax.numpy as jnp
from jax import lax
from jax.experimental import pallas as pl
from jax.experimental.pallas import tpu as pltpu

_LOG_2PI = math.log(2.0 * math.pi)


def _round_up(x, m):
    return ((x + m - 1) // m) * m


def _cdiv(a, b):
    return (a + b - 1) // b


def _make_logp_kernel(D, D_tile, grid_d):
    """Kernel specialized at trace time on the D tiling (mask only the ragged tail)."""
    n_chunks = D_tile // 128
    tail = D - (grid_d - 1) * D_tile          # valid cols in the LAST D-tile (1..D_tile)
    tail_full = tail // 128
    tail_rem = tail % 128
    ragged = tail != D_tile
    last = grid_d - 1

    def _accumulate(x_ref, acc, n_full, rem):
        # Chunk-by-chunk square+accumulate: no [B_tile, D_tile] f32 temporary,
        # acc stays lane-resident ([B_tile, 128]) in vregs; VPU-only adds.
        for j in range(n_full):
            c = x_ref[:, j * 128:(j + 1) * 128].astype(jnp.float32)
            acc = acc + c * c
        if rem:
            # Ragged tail chunk: zero out-of-range lanes BEFORE squaring
            # (the out-of-bounds part of the block may hold non-finite garbage).
            c = x_ref[:, n_full * 128:(n_full + 1) * 128].astype(jnp.float32)
            lane = lax.broadcasted_iota(jnp.int32, c.shape, 1)
            c = jnp.where(lane < rem, c, 0.0)
            acc = acc + c * c
        return acc

    def kernel(x_ref, o_ref, acc_ref):
        # x_ref:   [B_tile, D_tile] input block (any float dtype)
        # o_ref:   [B_tile, 1]      output block (same block across the D axis)
        # acc_ref: [B_tile, 128]    f32 lane-resident partial-sum accumulator
        k = pl.program_id(1)

        @pl.when(k == 0)
        def _():
            acc_ref[...] = jnp.zeros_like(acc_ref)

        if not ragged:
            acc_ref[...] = _accumulate(x_ref, acc_ref[...], n_chunks, 0)
        elif grid_d == 1:
            acc_ref[...] = _accumulate(x_ref, acc_ref[...], tail_full, tail_rem)
        else:
            @pl.when(k < last)
            def _():
                acc_ref[...] = _accumulate(x_ref, acc_ref[...], n_chunks, 0)

            @pl.when(k == last)
            def _():
                acc_ref[...] = _accumulate(x_ref, acc_ref[...], tail_full, tail_rem)

        @pl.when(k == last)
        def _():
            # Single cross-lane (XLU) reduce per output row, only at finalize.
            o_ref[...] = -0.5 * jnp.sum(acc_ref[...], axis=1, keepdims=True)

    return kernel


def _input_spec(B_tile, D_tile, nbuf):
    if nbuf > 2:
        try:
            return pl.BlockSpec((B_tile, D_tile), lambda i, k: (i, k),
                                pipeline_mode=pl.Buffered(nbuf))
        except TypeError:  # pipeline_mode unavailable -> fall back to default (2)
            pass
    return pl.BlockSpec((B_tile, D_tile), lambda i, k: (i, k))


def prior_log_p(x, *, block_bytes=8 << 20):
    """Standard-Normal prior log-density.

    Args:
      x: [B, C, H, W] array (NCHW, matching the PyTorch convention). Any float
         dtype (bf16 inputs are read as bf16 from HBM and upcast in-kernel).
      block_bytes: target HBM bytes per input block (exposed for testing).
    Returns:
      [B] float32 log-probabilities.
    """
    B = x.shape[0]
    D = 1
    for s in x.shape[1:]:
        D *= s
    x2d = x.reshape(B, D)                     # free metadata reshape, no copy
    itemsize = jnp.dtype(x.dtype).itemsize

    # ---- B tiling: >= 2 B-tiles whenever B >= 9 so the "parallel" batch axis
    # shards across both v7x TensorCores; cap at 128 rows so the lane-resident
    # accumulator stays <= 16 vregs (no spills).
    if B <= 8:
        B_tile = B                            # block == full dim (allowed even if not %8)
    elif B < 16:
        B_tile = 8
    else:
        B_tile = min(128, 8 * _cdiv(_cdiv(B, 2), 8))
    grid_b = _cdiv(B, B_tile)
    # TODO(synk): for tiny B with huge D on v7x, a leading parallel axis splitting D
    # across the two TensorCores (partial sums combined in the wrapper) would recover
    # the second core; unnecessary at these shapes.

    # ---- D tiling: byte-budgeted (~8 MiB per input block), multiple of 128,
    # cdiv grid (no rounding D up to a tile multiple, no host padding).  Also
    # bound the unrolled chunk loop so trace/compile time stays sane.
    d_budget = max(128, (block_bytes // max(1, B_tile * itemsize)) // 128 * 128)
    chunk_vregs = max(1, (B_tile + 7) // 8)
    max_chunks = max(1, min(1024, 4096 // chunk_vregs))
    D_tile = min(_round_up(D, 128), d_budget, max_chunks * 128)
    grid_d = _cdiv(D, D_tile)

    grid = (grid_b, grid_d)
    total_steps = grid_b * grid_d
    block_b = B_tile * D_tile * itemsize

    # Triple-buffer the input only when there are enough grid steps for the
    # extra depth to hide DMA jitter on this near-zero-compute kernel.
    nbuf = 3 if total_steps >= 3 else 2
    in_spec = _input_spec(B_tile, D_tile, nbuf)

    # Explicit VMEM limit: covers v5e's 16 MiB scoped default for the larger
    # tiles while staying below v7x's 64 MiB physical VMEM.
    vmem_need = nbuf * block_b + B_tile * 128 * 4 + 2 * B_tile * 4
    vmem_limit = int(min(max(vmem_need + (4 << 20), 32 << 20), 56 << 20))

    cost = pl.CostEstimate(
        flops=2 * B * D,
        transcendentals=0,
        bytes_accessed=B * D * itemsize + B * 4,
    )

    out = pl.pallas_call(
        _make_logp_kernel(D, D_tile, grid_d),
        out_shape=jax.ShapeDtypeStruct((B, 1), jnp.float32),
        grid_spec=pltpu.PrefetchScalarGridSpec(
            num_scalar_prefetch=0,
            grid=grid,
            in_specs=[in_spec],
            out_specs=pl.BlockSpec((B_tile, 1), lambda i, k: (i, 0)),
            scratch_shapes=[pltpu.VMEM((B_tile, 128), jnp.float32)],
        ),
        compiler_params=pltpu.CompilerParams(
            # batch axis shards across TensorCores (v7x); reduction axis last.
            dimension_semantics=("parallel", "arbitrary"),
            vmem_limit_bytes=vmem_limit,
        ),
        cost_estimate=cost,
    )(x2d)

    # Constant term applied exactly once, with the TRUE (un-tiled) D.
    return out[:, 0] + (-0.5 * D * _LOG_2PI)


def prior_log_p_ref(x):
    xf = x.astype(jnp.float32)
    return jnp.sum(-0.5 * (xf * xf + _LOG_2PI), axis=tuple(range(1, x.ndim)))


if __name__ == "__main__":
    key = jax.random.PRNGKey(0)
    k1, k2, k3 = jax.random.split(key, 3)

    # Primary: small NCHW latent, batch=2, channels=4, spatial=16x16 (D=1024).
    x = jax.random.normal(k1, (2, 4, 16, 16), dtype=jnp.float32)
    out = prior_log_p(x)
    jax.block_until_ready(out)
    ref = prior_log_p_ref(x)
    assert out.shape == (2,), out.shape
    assert jnp.allclose(out, ref, rtol=1e-5, atol=1e-4), (out, ref)

    # Ragged B and D + multi-step reduction + Buffered(3), by forcing tiny blocks.
    x2 = jax.random.normal(k2, (20, 3, 10, 10), dtype=jnp.float32)
    out2 = prior_log_p(x2, block_bytes=1024)
    jax.block_until_ready(out2)
    ref2 = prior_log_p_ref(x2)
    assert out2.shape == (20,), out2.shape
    assert jnp.allclose(out2, ref2, rtol=1e-5, atol=1e-3), (out2, ref2)

    # bf16 input path (upcast happens chunk-wise in-kernel).
    x3 = jax.random.normal(k3, (8, 4, 8, 8), dtype=jnp.bfloat16)
    out3 = prior_log_p(x3)
    jax.block_until_ready(out3)
    ref3 = prior_log_p_ref(x3)
    assert out3.shape == (8,), out3.shape
    assert jnp.allclose(out3, ref3, rtol=1e-3, atol=5e-2), (out3, ref3)

    print("KERNEL_OK")
</pallas_src>

<mosaic_0001>
module attributes {stable_mosaic.version = 11 : i64} {
  func.func @kernel(%arg0: i32, %arg1: i32, %arg2: memref<2x1024xf32, #tpu.memory_space<vmem>>, %arg3: memref<2x1xf32, #tpu.memory_space<vmem>>, %arg4: memref<2x128xf32, #tpu.memory_space<vmem>>) attributes {dimension_semantics = [#tpu.dimension_semantics<parallel>, #tpu.dimension_semantics<arbitrary>], iteration_bounds = array<i64: 1, 1>, scalar_prefetch = 0 : i64, scratch_operands = 1 : i64, tpu.core_type = #tpu.core_type<tc>, window_params = [{transform_indices = @transform_0, window_bounds = array<i64: 2, 1024>}, {transform_indices = @transform_1, window_bounds = array<i64: 2, 1>}]} {
    %c0_i32 = arith.constant 0 : i32
    %0 = arith.cmpi eq, %arg1, %c0_i32 : i32
    %1 = arith.extui %0 : i1 to i32
    %c0_i32_0 = arith.constant 0 : i32
    %2 = arith.cmpi ne, %1, %c0_i32_0 : i32
    scf.if %2 {
      %cst = arith.constant 0.000000e+00 : f32
      %32 = vector.broadcast %cst : f32 to vector<2x128xf32>
      %c0_15 = arith.constant 0 : index
      %c0_16 = arith.constant 0 : index
      %33 = vector.load %arg4[%c0_15, %c0_16] : memref<2x128xf32, #tpu.memory_space<vmem>>, vector<2x128xf32>
      tpu.vector_store %arg4[%c0_15, %c0_16], %32 {strides = array<i32>} : memref<2x128xf32, #tpu.memory_space<vmem>>, vector<2x128xf32>,
    } else {
    }
    %c0 = arith.constant 0 : index
    %c0_1 = arith.constant 0 : index
    %3 = vector.load %arg4[%c0, %c0_1] : memref<2x128xf32, #tpu.memory_space<vmem>>, vector<2x128xf32>
    %c0_2 = arith.constant 0 : index
    %c0_3 = arith.constant 0 : index
    %4 = vector.load %arg2[%c0_2, %c0_3] : memref<2x1024xf32, #tpu.memory_space<vmem>>, vector<2x128xf32>
    %5 = arith.mulf %4, %4 : vector<2x128xf32>
    %6 = arith.addf %3, %5 : vector<2x128xf32>
    %c0_4 = arith.constant 0 : index
    %c128 = arith.constant 128 : index
    %7 = vector.load %arg2[%c0_4, %c128] : memref<2x1024xf32, #tpu.memory_space<vmem>>, vector<2x128xf32>
    %8 = arith.mulf %7, %7 : vector<2x128xf32>
    %9 = arith.addf %6, %8 : vector<2x128xf32>
    %c0_5 = arith.constant 0 : index
    %c256 = arith.constant 256 : index
    %10 = vector.load %arg2[%c0_5, %c256] : memref<2x1024xf32, #tpu.memory_space<vmem>>, vector<2x128xf32>
    %11 = arith.mulf %10, %10 : vector<2x128xf32>
    %12 = arith.addf %9, %11 : vector<2x128xf32>
    %c0_6 = arith.constant 0 : index
    %c384 = arith.constant 384 : index
    %13 = vector.load %arg2[%c0_6, %c384] : memref<2x1024xf32, #tpu.memory_space<vmem>>, vector<2x128xf32>
    %14 = arith.mulf %13, %13 : vector<2x128xf32>
    %15 = arith.addf %12, %14 : vector<2x128xf32>
    %c0_7 = arith.constant 0 : index
    %c512 = arith.constant 512 : index
    %16 = vector.load %arg2[%c0_7, %c512] : memref<2x1024xf32, #tpu.memory_space<vmem>>, vector<2x128xf32>
    %17 = arith.mulf %16, %16 : vector<2x128xf32>
    %18 = arith.addf %15, %17 : vector<2x128xf32>
    %c0_8 = arith.constant 0 : index
    %c640 = arith.constant 640 : index
    %19 = vector.load %arg2[%c0_8, %c640] : memref<2x1024xf32, #tpu.memory_space<vmem>>, vector<2x128xf32>
    %20 = arith.mulf %19, %19 : vector<2x128xf32>
    %21 = arith.addf %18, %20 : vector<2x128xf32>
    %c0_9 = arith.constant 0 : index
    %c768 = arith.constant 768 : index
    %22 = vector.load %arg2[%c0_9, %c768] : memref<2x1024xf32, #tpu.memory_space<vmem>>, vector<2x128xf32>
    %23 = arith.mulf %22, %22 : vector<2x128xf32>
    %24 = arith.addf %21, %23 : vector<2x128xf32>
    %c0_10 = arith.constant 0 : index
    %c896 = arith.constant 896 : index
    %25 = vector.load %arg2[%c0_10, %c896] : memref<2x1024xf32, #tpu.memory_space<vmem>>, vector<2x128xf32>
    %26 = arith.mulf %25, %25 : vector<2x128xf32>
    %27 = arith.addf %24, %26 : vector<2x128xf32>
    %c0_11 = arith.constant 0 : index
    %c0_12 = arith.constant 0 : index
    %28 = vector.load %arg4[%c0_11, %c0_12] : memref<2x128xf32, #tpu.memory_space<vmem>>, vector<2x128xf32>
    tpu.vector_store %arg4[%c0_11, %c0_12], %27 {strides = array<i32>} : memref<2x128xf32, #tpu.memory_space<vmem>>, vector<2x128xf32>,
    %c0_i32_13 = arith.constant 0 : i32
    %29 = arith.cmpi eq, %arg1, %c0_i32_13 : i32
    %30 = arith.extui %29 : i1 to i32
    %c0_i32_14 = arith.constant 0 : i32
    %31 = arith.cmpi ne, %30, %c0_i32_14 : i32
    scf.if %31 {
      %c0_15 = arith.constant 0 : index
      %c0_16 = arith.constant 0 : index
      %32 = vector.load %arg4[%c0_15, %c0_16] : memref<2x128xf32, #tpu.memory_space<vmem>>, vector<2x128xf32>
      %cst = arith.constant dense<0.000000e+00> : vector<2xf32>
      %33 = vector.multi_reduction <add>, %32, %cst [1] : vector<2x128xf32> to vector<2xf32>
      %34 = vector.shape_cast %33 : vector<2xf32> to vector<2x1xf32>
      %cst_17 = arith.constant -5.000000e-01 : f32
      %35 = vector.broadcast %cst_17 : f32 to vector<2x1xf32>
      %36 = arith.mulf %35, %34 : vector<2x1xf32>
      %c0_18 = arith.constant 0 : index
      %c0_19 = arith.constant 0 : index
      %37 = vector.load %arg3[%c0_18, %c0_19] : memref<2x1xf32, #tpu.memory_space<vmem>>, vector<2x1xf32>
      tpu.vector_store %arg3[%c0_18, %c0_19], %36 {strides = array<i32>} : memref<2x1xf32, #tpu.memory_space<vmem>>, vector<2x1xf32>,
    } else {
    }
    return
  }
  func.func @transform_0(%arg0: i32, %arg1: i32) -> (i32, i32) {
    %c0_i32 = arith.constant 0 : i32
    return %arg0, %arg1 : i32, i32
  }
  func.func @transform_1(%arg0: i32, %arg1: i32) -> (i32, i32) {
    %c0_i32 = arith.constant 0 : i32
    %c0_i32_0 = arith.constant 0 : i32
    return %arg0, %c0_i32 : i32, i32
  }
}

</mosaic_0001>

<llo_original>
// kernel: tpu_custom_call.1
$region0: #{tpu_custom_call.1}
  #allocation0 [shape = 'u32[]', space=smem, size = 0x4, offset = 0x4, fixed_abs, tag = 'smem constant byte address 0x4 - core index']
  #allocation1 [shape = 'u32[144,128]{1,0:T(1,128)}', space=vmem, size = 0x12000, scoped, tag = 'internal scratch']
  #allocation2 [shape = 'f32[2,128]{1,0:T(2,128)}', space=vmem, size = 0x400, scoped, tag = 'scratch operand']
  %s0 = inlined_call_operand.hbm [shape: f32[2,1024], index: 0, kind: input, shape index: {}]
  %s1 = inlined_call_operand.vmem [shape: f32[2,1], index: 1, kind: output, shape index: {}]
  %s2 = sld [smem:[#allocation0]]
  $region26: #{tpu_custom_call.1} parent=0
    _
  %s4 = ssub.s32 1, %s2
  %s5 = scalar_select 0, %s4, %s2
  $region1: #{tpu_custom_call.1} parent=0
    #allocation3 [shape = 'u8[8192]{0}', space=vmem, size = 0x2000, scoped, tag = 'input window, operand 0, single buffered']
    #allocation4 [shape = 's32[1]{0}', space=sflag, size = 0x4, scoped, tag = 'scoped memory for tpu_custom_call.1']
    %6 = vsyncpa [#allocation4], 0
    // Predicated region
    $region2: #{tpu_custom_call.1} parent=1 // pred_check
      _
    $region3: #{tpu_custom_call.1} parent=1 // pred_check_branch
      %8 = sbr.rel (0) target = $region5
    $region4: #{tpu_custom_call.1} parent=1 // pred_region
      %s10 = ssub.s32 256, 256
      %11 = vsyncadd [#allocation4], %s10
      %s13 = sshll.u32 [#allocation3], 4
      %s14 = int_to_ptr.vmem [resolvable:$true] %s13
      %16 = dma.hbm_to_vmem [thread:$0]  %s0, 256, %s14, [#allocation4]
    $region5: #{tpu_custom_call.1} parent=1 // pred_fallthru
      _
    // Predicated region
    $region6: #{tpu_custom_call.1} parent=1 // pred_check
      _
    $region7: #{tpu_custom_call.1} parent=1 // pred_check_branch
      %18 = sbr.rel (0) target = $region9
    $region8: #{tpu_custom_call.1} parent=1 // pred_region
      %19 = dma.done [#allocation4], 256
    $region9: #{tpu_custom_call.1} parent=1 // pred_fallthru
      _
    %p20 = scmp.eq.s32.totalorder 0, 0
    // Predicated region
    $region10: #{tpu_custom_call.1} parent=1 // pred_check
      %p21 = pneg %p20
    $region11: #{tpu_custom_call.1} parent=1 // pred_check_branch
      %23 = sbr.rel (%p21) target = $region13
    $region12: #{tpu_custom_call.1} parent=1 // pred_region
      %24 = vst [vmem:[#allocation2] sm:$0x3] 0.0
    $region13: #{tpu_custom_call.1} parent=1 // pred_fallthru
      _
    %v25 = vld [vmem:[#allocation2] sm:$0x3]
    %v26 = vld [vmem:[#allocation3] sm:$0x3]
    %v27 = vmul.f32 %v26, %v26
    %v28 = vadd.f32 %v25, %v27
    %v29 = vld [vmem:[#allocation3 + $0x2] sm:$0x3]
    %v30 = vmul.f32 %v29, %v29
    %v31 = vadd.f32 %v28, %v30
    %v32 = vld [vmem:[#allocation3 + $0x4] sm:$0x3]
    %v33 = vmul.f32 %v32, %v32
    %v34 = vadd.f32 %v31, %v33
    %v35 = vld [vmem:[#allocation3 + $0x6] sm:$0x3]
    %v36 = vmul.f32 %v35, %v35
    %v37 = vadd.f32 %v34, %v36
    %v38 = vld [vmem:[#allocation3 + $0x8] sm:$0x3]
    %v39 = vmul.f32 %v38, %v38
    %v40 = vadd.f32 %v37, %v39
    %v41 = vld [vmem:[#allocation3 + $0xa] sm:$0x3]
    %v42 = vmul.f32 %v41, %v41
    %v43 = vadd.f32 %v40, %v42
    %v44 = vld [vmem:[#allocation3 + $0xc] sm:$0x3]
    %v45 = vmul.f32 %v44, %v44
    %v46 = vadd.f32 %v43, %v45
    %v47 = vld [vmem:[#allocation3 + $0xe] sm:$0x3]
    %v48 = vmul.f32 %v47, %v47
    %v49 = vadd.f32 %v46, %v48
    %50 = vst [vmem:[#allocation2] sm:$0x3] %v49
    // Predicated region
    $region14: #{tpu_custom_call.1} parent=1 // pred_check
      %p51 = pneg %p20
    $region15: #{tpu_custom_call.1} parent=1 // pred_check_branch
      %53 = sbr.rel (%p51) target = $region17
    $region16: #{tpu_custom_call.1} parent=1 // pred_region
      %v54 = vld [vmem:[#allocation2] sm:$0x3]
      %vm55 = vcmask 1041408
      %v56 = vsel %vm55, %v54, 0.0
      %57 = vadd.xlane.f32.xlu0 %v56
      %v58 = vpop.xlane.xlu0 %57
      %v59 = vmul.f32 %v58, -0.5
      %vm60 = vcmask 1024
      %61 = vst.msk [vmem:[%s1] sm:$0x3] %vm60, %v59
    $region17: #{tpu_custom_call.1} parent=1 // pred_fallthru
      _
    // Predicated region
    $region18: #{tpu_custom_call.1} parent=1 // pred_check
      _
    $region19: #{tpu_custom_call.1} parent=1 // pred_check_branch
      %63 = sbr.rel (0) target = $region21
    $region20: #{tpu_custom_call.1} parent=1 // pred_region
      _
    $region21: #{tpu_custom_call.1} parent=1 // pred_fallthru
      _
    // Predicated region
    $region22: #{tpu_custom_call.1} parent=1 // pred_check
      _
    $region23: #{tpu_custom_call.1} parent=1 // pred_check_branch
      %65 = sbr.rel (0) target = $region25
    $region24: #{tpu_custom_call.1} parent=1 // pred_region
      _
    $region25: #{tpu_custom_call.1} parent=1 // pred_fallthru
      _
    %66 = vsyncpa [#allocation4], 1

</llo_original>
